<compile_context>
chip_gen: v7x
topology: tpu7x:2x2x1
jax: 0.10.0
libtpu: 0.0.40
codegen_flags: <defaults>
</compile_context>

<pallas_src>
import jax
import jax.numpy as jnp
from jax.experimental import pallas as pl
from jax.experimental.pallas import tpu as pltpu


def _round_up(n, m):
    return ((n + m - 1) // m) * m


def _mlp_kernel(x_ref, w1_ref, b1_ref, w2_ref, b2_ref, o_ref):
    # fc_global: bf16 x bf16 -> f32 accumulation on the MXU.  The f32->bf16 cast of
    # the streamed x tile is a VPU op fully hidden under the tile DMA.
    x = x_ref[...].astype(jnp.bfloat16)
    h = jnp.dot(x, w1_ref[...], preferred_element_type=jnp.float32)
    # Bias + F.relu in f32 on the VPU (bias is a resident (1, Hp) block; the add
    # broadcasts in-vreg, nothing materialized per step).
    h = jnp.maximum(h + b1_ref[...], 0.0)
    # out: bf16 x bf16 -> f32 accumulation; output kept at the true target width T.
    y = jnp.dot(h.astype(jnp.bfloat16), w2_ref[...],
                preferred_element_type=jnp.float32)
    o_ref[...] = (y + b2_ref[...]).astype(o_ref.dtype)


def prepare_params(w1, b1, w2, b2):
    """One-time parameter preparation (canonical padded/bf16 format).

    Pads the hidden width to a multiple of 128 lanes (exact: relu(0+0)=0 and the
    corresponding w2 rows are 0, so padded hidden units contribute nothing) and
    casts weights to bf16.  Done once, NOT per forward call.
    """
    F_, H = w1.shape
    T = w2.shape[1]
    Hp = _round_up(H, 128)
    w1p = jnp.zeros((F_, Hp), jnp.bfloat16).at[:, :H].set(w1.astype(jnp.bfloat16))
    b1p = jnp.zeros((1, Hp), jnp.float32).at[:, :H].set(
        b1.reshape(1, H).astype(jnp.float32))
    w2p = jnp.zeros((Hp, T), jnp.bfloat16).at[:H, :].set(w2.astype(jnp.bfloat16))
    b2p = b2.reshape(1, T).astype(jnp.float32)
    return w1p, b1p, w2p, b2p


def mlp_classifier_forward(x, params, batch=None, *, tile_m=1024,
                           core_parallel=False):
    """out = relu(x @ w1 + b1) @ w2 + b2.   `batch` is unused (parity with PyTorch).

    x: [N, F] f32.  params: output of prepare_params().  Returns [N, T] f32.
    """
    del batch  # unused by the PyTorch forward
    w1p, b1p, w2p, b2p = params
    N, F_ = x.shape
    Hp = w1p.shape[1]
    T = w2p.shape[1]

    # Row tile: multiple of 16 sublanes (bf16 rows pack in pairs); a single block
    # covers all rows when N is small (grid=(1,) -> no pipeline overhead).
    tile_m = max(16, min(_round_up(tile_m, 16), _round_up(N, 16)))
    grid_m = pl.cdiv(N, tile_m)

    # VMEM budget with real VMEM footprints (lane/sublane padding included):
    lane, sub = 128, 8
    Fl = _round_up(F_, lane)
    Tl = _round_up(T, lane)
    vmem_bytes = (
        2 * tile_m * Fl * 4                       # x tiles (f32, lane-padded, 2 bufs)
        + 2 * tile_m * Tl * 4                     # out tiles (f32, lane-padded, 2 bufs)
        + 2 * (_round_up(F_, 16) * Hp * 2         # resident bf16 W1 (2 bufs)
               + _round_up(Hp, 16) * Tl * 2)      # resident bf16 W2 (2 bufs)
        + 2 * (sub * Hp * 4 + sub * Tl * 4)       # bias blocks occupy full (8,128) tiles
        + tile_m * Hp * 4 + tile_m * Tl * 4       # h / y intermediates
    )
    # 32 MiB clamp is safe on every generation (v7x scoped default); tiny usage here.
    vmem_limit = int(min(max(vmem_bytes + (4 << 20), 16 << 20), 32 << 20))

    cost = pl.CostEstimate(
        flops=2 * N * (F_ * Hp + Hp * T),
        transcendentals=0,
        bytes_accessed=(N * F_ * 4 + F_ * Hp * 2 + Hp * T * 2
                        + Hp * 4 + T * 4 + N * T * 4),
    )

    # Row axis is embarrassingly parallel.  On 2-TC v7x set core_parallel=True to
    # shard the grid across TensorCores; "parallel" is the safe default elsewhere.
    sem = (pltpu.CORE_PARALLEL,) if core_parallel else ("parallel",)

    out = pl.pallas_call(
        _mlp_kernel,
        out_shape=jax.ShapeDtypeStruct((N, T), jnp.float32),
        grid_spec=pl.GridSpec(
            grid=(grid_m,),
            in_specs=[
                pl.BlockSpec((tile_m, F_), lambda i: (i, 0)),   # streamed x row tile
                pl.BlockSpec((F_, Hp), lambda i: (0, 0)),       # resident weight 1
                pl.BlockSpec((1, Hp), lambda i: (0, 0)),        # resident bias 1
                pl.BlockSpec((Hp, T), lambda i: (0, 0)),        # resident weight 2
                pl.BlockSpec((1, T), lambda i: (0, 0)),         # resident bias 2
            ],
            out_specs=pl.BlockSpec((tile_m, T), lambda i: (i, 0)),
        ),
        compiler_params=pltpu.CompilerParams(
            dimension_semantics=sem,
            vmem_limit_bytes=vmem_limit,
        ),
        cost_estimate=cost,
    )(x.astype(jnp.float32), w1p, b1p, w2p, b2p)

    return out


def init_params(key, dim_features, hidden_units, dim_target):
    # Deterministic synthetic init (mimics torch Linear's U(-1/sqrt(fan_in), +) range).
    k1, k2, k3, k4 = jax.random.split(key, 4)
    lim1 = 1.0 / jnp.sqrt(dim_features)
    lim2 = 1.0 / jnp.sqrt(hidden_units)
    w1 = jax.random.uniform(k1, (dim_features, hidden_units), jnp.float32, -lim1, lim1)
    b1 = jax.random.uniform(k2, (1, hidden_units), jnp.float32, -lim1, lim1)
    w2 = jax.random.uniform(k3, (hidden_units, dim_target), jnp.float32, -lim2, lim2)
    b2 = jax.random.uniform(k4, (1, dim_target), jnp.float32, -lim2, lim2)
    return w1, b1, w2, b2


def _reference(x, w1, b1, w2, b2):
    return jnp.maximum(x @ w1 + b1, 0.0) @ w2 + b2


if __name__ == "__main__":
    dim_features, hidden_units, dim_target = 16, 32, 4

    key = jax.random.PRNGKey(0)
    kx1, kx2, kp = jax.random.split(key, 3)
    w1, b1, w2, b2 = init_params(kp, dim_features, hidden_units, dim_target)
    params = prepare_params(w1, b1, w2, b2)   # one-time pad/cast, not per call

    # Small case consistent with the module (graph-level MLP on pooled features).
    N_small = 8
    x_small = jax.random.normal(kx1, (N_small, dim_features), jnp.float32)
    batch = jnp.zeros((N_small,), jnp.int32)  # unused by forward, interface parity only

    out_small = jax.block_until_ready(
        mlp_classifier_forward(x_small, params, batch))
    ref_small = _reference(x_small, w1, b1, w2, b2)
    assert out_small.shape == (N_small, dim_target)
    # bf16 matmul inputs (f32 accumulation) -> loosened tolerance vs f32 reference.
    assert jnp.allclose(out_small, ref_small, atol=2e-2, rtol=2e-2)

    # Larger case to exercise row tiling / ragged last block (N not a tile multiple).
    N_big = 1000
    x_big = jax.random.normal(kx2, (N_big, dim_features), jnp.float32)
    out_big = jax.block_until_ready(
        mlp_classifier_forward(x_big, params, tile_m=512))
    ref_big = _reference(x_big, w1, b1, w2, b2)
    assert out_big.shape == (N_big, dim_target)
    assert jnp.allclose(out_big, ref_big, atol=2e-2, rtol=2e-2)

    print("KERNEL_OK")
</pallas_src>

<mosaic_0001>
module attributes {stable_mosaic.version = 11 : i64} {
  func.func @_mlp_kernel(%arg0: i32, %arg1: memref<16x16xf32, #tpu.memory_space<vmem>>, %arg2: memref<16x128xbf16, #tpu.memory_space<vmem>>, %arg3: memref<1x128xf32, #tpu.memory_space<vmem>>, %arg4: memref<128x4xbf16, #tpu.memory_space<vmem>>, %arg5: memref<1x4xf32, #tpu.memory_space<vmem>>, %arg6: memref<16x4xf32, #tpu.memory_space<vmem>>) attributes {dimension_semantics = [#tpu.dimension_semantics<parallel>], iteration_bounds = array<i64: 1>, scalar_prefetch = 0 : i64, scratch_operands = 0 : i64, tpu.core_type = #tpu.core_type<tc>, window_params = [{transform_indices = @transform_0, window_bounds = array<i64: 16, 16>}, {pipeline_mode = #tpu.pipeline_mode<synchronous>, transform_indices = @transform_1, window_bounds = array<i64: 16, 128>}, {pipeline_mode = #tpu.pipeline_mode<synchronous>, transform_indices = @transform_2, window_bounds = array<i64: 1, 128>}, {pipeline_mode = #tpu.pipeline_mode<synchronous>, transform_indices = @transform_3, window_bounds = array<i64: 128, 4>}, {pipeline_mode = #tpu.pipeline_mode<synchronous>, transform_indices = @transform_4, window_bounds = array<i64: 1, 4>}, {transform_indices = @transform_5, window_bounds = array<i64: 16, 4>}]} {
    %c0 = arith.constant 0 : index
    %c0_0 = arith.constant 0 : index
    %0 = vector.load %arg1[%c0, %c0_0] : memref<16x16xf32, #tpu.memory_space<vmem>>, vector<16x16xf32>
    %1 = arith.truncf %0 : vector<16x16xf32> to vector<16x16xbf16>
    %c0_1 = arith.constant 0 : index
    %c0_2 = arith.constant 0 : index
    %2 = vector.load %arg2[%c0_1, %c0_2] : memref<16x128xbf16, #tpu.memory_space<vmem>>, vector<16x128xbf16>
    %cst = arith.constant dense<0.000000e+00> : vector<16x128xf32>
    %3 = tpu.matmul %1, %2, %cst {dimension_numbers = #tpu.dot_dimension_numbers<[1], [0], [0], [1], [0, 0, 1, 1], [], []>} : vector<16x16xbf16>, vector<16x128xbf16>, vector<16x128xf32> -> vector<16x128xf32>
    %c0_3 = arith.constant 0 : index
    %c0_4 = arith.constant 0 : index
    %4 = vector.load %arg3[%c0_3, %c0_4] : memref<1x128xf32, #tpu.memory_space<vmem>>, vector<1x128xf32>
    %5 = vector.broadcast %4 : vector<1x128xf32> to vector<16x128xf32>
    %6 = arith.addf %3, %5 : vector<16x128xf32>
    %cst_5 = arith.constant 0.000000e+00 : f32
    %7 = vector.broadcast %cst_5 : f32 to vector<16x128xf32>
    %8 = arith.maximumf %6, %7 : vector<16x128xf32>
    %9 = arith.truncf %8 : vector<16x128xf32> to vector<16x128xbf16>
    %c0_6 = arith.constant 0 : index
    %c0_7 = arith.constant 0 : index
    %10 = vector.load %arg4[%c0_6, %c0_7] : memref<128x4xbf16, #tpu.memory_space<vmem>>, vector<128x4xbf16>
    %cst_8 = arith.constant dense<0.000000e+00> : vector<16x4xf32>
    %11 = tpu.matmul %9, %10, %cst_8 {dimension_numbers = #tpu.dot_dimension_numbers<[1], [0], [0], [1], [0, 0, 1, 1], [], []>} : vector<16x128xbf16>, vector<128x4xbf16>, vector<16x4xf32> -> vector<16x4xf32>
    %c0_9 = arith.constant 0 : index
    %c0_10 = arith.constant 0 : index
    %12 = vector.load %arg5[%c0_9, %c0_10] : memref<1x4xf32, #tpu.memory_space<vmem>>, vector<1x4xf32>
    %13 = vector.broadcast %12 : vector<1x4xf32> to vector<16x4xf32>
    %14 = arith.addf %11, %13 : vector<16x4xf32>
    %c0_11 = arith.constant 0 : index
    %c0_12 = arith.constant 0 : index
    %15 = vector.load %arg6[%c0_11, %c0_12] : memref<16x4xf32, #tpu.memory_space<vmem>>, vector<16x4xf32>
    tpu.vector_store %arg6[%c0_11, %c0_12], %14 {strides = array<i32>} : memref<16x4xf32, #tpu.memory_space<vmem>>, vector<16x4xf32>,
    return
  }
  func.func @transform_0(%arg0: i32) -> (i32, i32) {
    %c0_i32 = arith.constant 0 : i32
    %c0_i32_0 = arith.constant 0 : i32
    return %arg0, %c0_i32 : i32, i32
  }
  func.func @transform_1(%arg0: i32) -> (i32, i32) {
    %c0_i32 = arith.constant 0 : i32
    %c0_i32_0 = arith.constant 0 : i32
    %c0_i32_1 = arith.constant 0 : i32
    return %c0_i32, %c0_i32_0 : i32, i32
  }
  func.func @transform_2(%arg0: i32) -> (i32, i32) {
    %c0_i32 = arith.constant 0 : i32
    %c0_i32_0 = arith.constant 0 : i32
    %c0_i32_1 = arith.constant 0 : i32
    return %c0_i32, %c0_i32_0 : i32, i32
  }
  func.func @transform_3(%arg0: i32) -> (i32, i32) {
    %c0_i32 = arith.constant 0 : i32
    %c0_i32_0 = arith.constant 0 : i32
    %c0_i32_1 = arith.constant 0 : i32
    return %c0_i32, %c0_i32_0 : i32, i32
  }
  func.func @transform_4(%arg0: i32) -> (i32, i32) {
    %c0_i32 = arith.constant 0 : i32
    %c0_i32_0 = arith.constant 0 : i32
    %c0_i32_1 = arith.constant 0 : i32
    return %c0_i32, %c0_i32_0 : i32, i32
  }
  func.func @transform_5(%arg0: i32) -> (i32, i32) {
    %c0_i32 = arith.constant 0 : i32
    %c0_i32_0 = arith.constant 0 : i32
    return %arg0, %c0_i32 : i32, i32
  }
}

</mosaic_0001>

<llo_original>
// kernel: tpu_custom_call.1
$region0: #{tpu_custom_call.1}
  #allocation0 [shape = 'u32[]', space=smem, size = 0x4, offset = 0x4, fixed_abs, tag = 'smem constant byte address 0x4 - core index']
  #allocation1 [shape = 'u32[144,128]{1,0:T(1,128)}', space=vmem, size = 0x12000, scoped, tag = 'internal scratch']
  %s0 = inlined_call_operand.vmem [shape: f32[8,16], index: 0, kind: input, shape index: {}]
  %s1 = inlined_call_operand.vmem [shape: bf16[16,128], index: 1, kind: input, shape index: {}]
  %s2 = inlined_call_operand.vmem [shape: f32[1,128], index: 2, kind: input, shape index: {}]
  %s3 = inlined_call_operand.vmem [shape: bf16[128,4], index: 3, kind: input, shape index: {}]
  %s4 = inlined_call_operand.vmem [shape: f32[1,4], index: 4, kind: input, shape index: {}]
  %s5 = inlined_call_operand.vmem [shape: f32[8,4], index: 5, kind: output, shape index: {}]
  %s6 = sld [smem:[#allocation0]]
  $region64: #{tpu_custom_call.1} parent=0
    _
  %s8 = ssub.s32 1, %s6
  %s9 = scalar_select 0, %s8, %s6
  $region1: #{tpu_custom_call.1} parent=0
    #allocation2 [shape = 'u8[8192]{0}', space=vmem, size = 0x2000, scoped, tag = 'output window, operand 0, single buffered']
    // Predicated region
    $region2: #{tpu_custom_call.1} parent=1 // pred_check
      _
    $region3: #{tpu_custom_call.1} parent=1 // pred_check_branch
      %11 = sbr.rel (0) target = $region5
    $region4: #{tpu_custom_call.1} parent=1 // pred_region
      _
    $region5: #{tpu_custom_call.1} parent=1 // pred_fallthru
      _
    // Predicated region
    $region6: #{tpu_custom_call.1} parent=1 // pred_check
      _
    $region7: #{tpu_custom_call.1} parent=1 // pred_check_branch
      %13 = sbr.rel (0) target = $region9
    $region8: #{tpu_custom_call.1} parent=1 // pred_region
      _
    $region9: #{tpu_custom_call.1} parent=1 // pred_fallthru
      _
    // Predicated region
    $region10: #{tpu_custom_call.1} parent=1 // pred_check
      _
    $region11: #{tpu_custom_call.1} parent=1 // pred_check_branch
      %15 = sbr.rel (0) target = $region13
    $region12: #{tpu_custom_call.1} parent=1 // pred_region
      _
    $region13: #{tpu_custom_call.1} parent=1 // pred_fallthru
      _
    // Predicated region
    $region14: #{tpu_custom_call.1} parent=1 // pred_check
      _
    $region15: #{tpu_custom_call.1} parent=1 // pred_check_branch
      %17 = sbr.rel (0) target = $region17
    $region16: #{tpu_custom_call.1} parent=1 // pred_region
      _
    $region17: #{tpu_custom_call.1} parent=1 // pred_fallthru
      _
    // Predicated region
    $region18: #{tpu_custom_call.1} parent=1 // pred_check
      _
    $region19: #{tpu_custom_call.1} parent=1 // pred_check_branch
      %19 = sbr.rel (0) target = $region21
    $region20: #{tpu_custom_call.1} parent=1 // pred_region
      _
    $region21: #{tpu_custom_call.1} parent=1 // pred_fallthru
      _
    %v21 = vld [vmem:[%s0] sm:$0xff]
    %v22 = vld [vmem:[%s0 + $0x8] sm:$0xff]
    %v23 = vpack.c.bf16 %v22, %v21
    %v24 = vld [vmem:[%s1] sm:$0xf]
    %v25 = vld [vmem:[%s1 + $0x4] sm:$0xf]
    %v26 = vld [vmem:[%s2] sm:$0x1]
    %v28 = vlaneseq
    %v29 = vshrl.u32 %v28, 7
    %v30 = vsub.s32 0, %v29
    %v31 = vrot.slane %v26, %v30
    %v35 = vunpack.c.l.b16 %v24
    %v36 = vunpack.c.l.b16 %v25
    %v37 = vpack.c.b16 %v36, %v35
    %vm39 = vcmask 130048
    %v41 = vsel %vm39, %v23, 0
    %43 = vmatprep.subr.bf16.mxu0 0
    %44 = vmatpush1.bf16.msra.mxu0 %v37
    %45 = vmatprep.subr.bf16.mxu0 0
    %46 = vmatpush1.bf16.msra.mxu0 0
    %47 = vmatprep.subr.bf16.mxu0 0
    %48 = vmatpush1.bf16.msra.mxu0 0
    %49 = vmatprep.subr.bf16.mxu0 0
    %50 = vmatpush1.bf16.msra.mxu0 0
    %51 = vmatprep.subr.bf16.mxu0 0
    %52 = vmatpush1.bf16.msra.mxu0 0
    %53 = vmatprep.subr.bf16.mxu0 0
    %54 = vmatpush1.bf16.msra.mxu0 0
    %55 = vmatprep.subr.bf16.mxu0 0
    %56 = vmatpush1.bf16.msra.mxu0 0
    %57 = vmatprep.subr.bf16.mxu0 0
    %58 = vmatpush1.bf16.msra.mxu0 0
    %59 = vmatprep.subr.bf16.mxu0 0
    %60 = vmatpush1.bf16.msra.mxu0 0
    %61 = vmatprep.subr.bf16.mxu0 0
    %62 = vmatpush1.bf16.msra.mxu0 0
    %63 = vmatprep.subr.bf16.mxu0 0
    %64 = vmatpush1.bf16.msra.mxu0 0
    %65 = vmatprep.subr.bf16.mxu0 0
    %66 = vmatpush1.bf16.msra.mxu0 0
    %67 = vmatprep.subr.bf16.mxu0 0
    %68 = vmatpush1.bf16.msra.mxu0 0
    %69 = vmatprep.subr.bf16.mxu0 0
    %70 = vmatpush1.bf16.msra.mxu0 0
    %71 = vmatprep.subr.bf16.mxu0 0
    %72 = vmatpush1.bf16.msra.mxu0 0
    %73 = vmatprep.subr.bf16.mxu0 0
    %74 = vmatpush1.bf16.msra.mxu0 0
    %75 = vmatprep.mubr.bf16.mxu0 0
    %76 = vmatmul.mubr.bf16.gmra.mrb[0].mxu0 %v41
    %v77 = vpop.f32.mrb[0].mxu0
    %v78 = vadd.f32 %v31, %v77
    %v79 = vpop.f32.mrb[0].mxu0
    %v80 = vpop.f32.mrb[0].mxu0
    %v81 = vadd.f32 %v31, %v80
    %v82 = vpop.f32.mrb[0].mxu0
    %83 = vdwg.mxu0
    %v84 = vmax.f32 %v78, 0.0
    %v85 = vmax.f32 %v81, 0.0
    %v86 = vpack.c.bf16 %v85, %v84
    %v87 = vld [vmem:[%s3] sm:$0xf]
    %v88 = vld [vmem:[%s3 + $0x4] sm:$0xf]
    %v89 = vld [vmem:[%s3 + $0x8] sm:$0xf]
    %v90 = vld [vmem:[%s3 + $0xc] sm:$0xf]
    %v91 = vld [vmem:[%s3 + $0x10] sm:$0xf]
    %v92 = vld [vmem:[%s3 + $0x14] sm:$0xf]
    %v93 = vld [vmem:[%s3 + $0x18] sm:$0xf]
    %v94 = vld [vmem:[%s3 + $0x1c] sm:$0xf]
    %v95 = vld [vmem:[%s3 + $0x20] sm:$0xf]
    %v96 = vld [vmem:[%s3 + $0x24] sm:$0xf]
    %v97 = vld [vmem:[%s3 + $0x28] sm:$0xf]
    %v98 = vld [vmem:[%s3 + $0x2c] sm:$0xf]
    %v99 = vld [vmem:[%s3 + $0x30] sm:$0xf]
    %v100 = vld [vmem:[%s3 + $0x34] sm:$0xf]
    %v101 = vld [vmem:[%s3 + $0x38] sm:$0xf]
    %v102 = vld [vmem:[%s3 + $0x3c] sm:$0xf]
    %v103 = vld [vmem:[%s4] sm:$0x1]
    %v105 = vlaneseq
    %v106 = vshrl.u32 %v105, 7
    %v107 = vsub.s32 0, %v106
    %v108 = vrot.slane %v103, %v107
    %v126 = vunpack.c.l.b16 %v87
    %v127 = vunpack.c.l.b16 %v88
    %v128 = vunpack.c.l.b16 %v89
    %v129 = vunpack.c.l.b16 %v90
    %v130 = vunpack.c.l.b16 %v91
    %v131 = vunpack.c.l.b16 %v92
    %v132 = vunpack.c.l.b16 %v93
    %v133 = vunpack.c.l.b16 %v94
    %v134 = vunpack.c.l.b16 %v95
    %v135 = vunpack.c.l.b16 %v96
    %v136 = vunpack.c.l.b16 %v97
    %v137 = vunpack.c.l.b16 %v98
    %v138 = vunpack.c.l.b16 %v99
    %v139 = vunpack.c.l.b16 %v100
    %v140 = vunpack.c.l.b16 %v101
    %v141 = vunpack.c.l.b16 %v102
    %v142 = vpack.c.b16 %v127, %v126
    %v143 = vpack.c.b16 %v129, %v128
    %v144 = vpack.c.b16 %v131, %v130
    %v145 = vpack.c.b16 %v133, %v132
    %v146 = vpack.c.b16 %v135, %v134
    %v147 = vpack.c.b16 %v137, %v136
    %v148 = vpack.c.b16 %v139, %v138
    %v149 = vpack.c.b16 %v141, %v140
    %158 = vmatprep.subr.bf16.mxu0 0
    %159 = vmatpush1.bf16.msra.mxu0 %v142
    %160 = vmatprep.subr.bf16.mxu0 0
    %161 = vmatpush1.bf16.msra.mxu0 %v143
    %162 = vmatprep.subr.bf16.mxu0 0
    %163 = vmatpush1.bf16.msra.mxu0 %v144
    %164 = vmatprep.subr.bf16.mxu0 0
    %165 = vmatpush1.bf16.msra.mxu0 %v145
    %166 = vmatprep.subr.bf16.mxu0 0
    %167 = vmatpush1.bf16.msra.mxu0 %v146
    %168 = vmatprep.subr.bf16.mxu0 0
    %169 = vmatpush1.bf16.msra.mxu0 %v147
    %170 = vmatprep.subr.bf16.mxu0 0
    %171 = vmatpush1.bf16.msra.mxu0 %v148
    %172 = vmatprep.subr.bf16.mxu0 0
    %173 = vmatpush1.bf16.msra.mxu0 %v149
    %174 = vmatprep.subr.bf16.mxu0 0
    %175 = vmatpush1.bf16.msra.mxu0 0
    %176 = vmatprep.subr.bf16.mxu0 0
    %177 = vmatpush1.bf16.msra.mxu0 0
    %178 = vmatprep.subr.bf16.mxu0 0
    %179 = vmatpush1.bf16.msra.mxu0 0
    %180 = vmatprep.subr.bf16.mxu0 0
    %181 = vmatpush1.bf16.msra.mxu0 0
    %182 = vmatprep.subr.bf16.mxu0 0
    %183 = vmatpush1.bf16.msra.mxu0 0
    %184 = vmatprep.subr.bf16.mxu0 0
    %185 = vmatpush1.bf16.msra.mxu0 0
    %186 = vmatprep.subr.bf16.mxu0 0
    %187 = vmatpush1.bf16.msra.mxu0 0
    %188 = vmatprep.subr.bf16.mxu0 0
    %189 = vmatpush1.bf16.msra.mxu0 0
    %190 = vmatprep.mubr.bf16.mxu0 0
    %191 = vmatmul.mubr.bf16.gmra.mrb[0].mxu0 %v86
    %v192 = vpop.f32.mrb[0].mxu0
    %v193 = vadd.f32 %v108, %v192
    %v194 = vpop.f32.mrb[0].mxu0
    %v195 = vpop.f32.mrb[0].mxu0
    %v196 = vadd.f32 %v108, %v195
    %v197 = vpop.f32.mrb[0].mxu0
    %198 = vdwg.mxu0
    %vm199 = vcmask 31744
    %200 = vst.msk [vmem:[#allocation2] sm:$0xff] %vm199, %v193
    %201 = vst.msk [vmem:[#allocation2 + $0x8] sm:$0xff] %vm199, %v196
    // Predicated region
    $region22: #{tpu_custom_call.1} parent=1 // pred_check
      _
    $region23: #{tpu_custom_call.1} parent=1 // pred_check_branch
      %203 = sbr.rel (0) target = $region25
    $region24: #{tpu_custom_call.1} parent=1 // pred_region
      // Predicated region
      $region26: #{tpu_custom_call.1} parent=24 // pred_check
        _
      $region27: #{tpu_custom_call.1} parent=24 // pred_check_branch
        %205 = sbr.rel (0) target = $region29
      $region28: #{tpu_custom_call.1} parent=24 // pred_region
        // Predicated region
        $region30: #{tpu_custom_call.1} parent=28 // pred_check
          _
        $region31: #{tpu_custom_call.1} parent=28 // pred_check_branch
          %207 = sbr.rel (0) target = $region33
        $region32: #{tpu_custom_call.1} parent=28 // pred_region
          // Predicated region
          $region45: #{tpu_custom_call.1} parent=32 // pred_check
            _
          $region46: #{tpu_custom_call.1} parent=32 // pred_check_branch
            %222 = sbr.rel (0) target = $region48
          $region47: #{tpu_custom_call.1} parent=32 // pred_region
            loop: start=0, step=1, limit=1
            $region49: #{tpu_custom_call.1} parent=47 // loop_pre_header
              _
            $region50: #{tpu_custom_call.1} parent=47 // loop_header
              %s224 = sphi 0, %s228
              %p225 = scmp.ge.s32.totalorder %s224, 1
              %s229 = sphi [#allocation2], [#allocation2]
              %s230 = sphi %s5, %s5
            $region51: #{tpu_custom_call.1} parent=47 // loop_header_branch
              %227 = sbr.rel (%p225) target = $region55
            $region52: #{tpu_custom_call.1} parent=47 // loop_body
              %v231 = vld [vmem:[%s229] sm:$0xff]
              %232 = vst [vmem:[%s230] sm:$0xff] %v231
            $region53: #{tpu_custom_call.1} parent=47 // loop_footer
              %s228 = sadd.s32 1, %s224
            $region54: #{tpu_custom_call.1} parent=47 // loop_footer_branch
              %223 = sbr.rel target = $region50
            $region55: #{tpu_custom_call.1} parent=47 // loop_exit
              _
          $region48: #{tpu_custom_call.1} parent=32 // pred_fallthru
            _
          // Predicated region
          $region56: #{tpu_custom_call.1} parent=32 // pred_check
            _
          $region57: #{tpu_custom_call.1} parent=32 // pred_check_branch
            %234 = sbr.rel target = $region59
          $region58: #{tpu_custom_call.1} parent=32 // pred_region
            _
          $region59: #{tpu_custom_call.1} parent=32 // pred_fallthru
            _
        $region33: #{tpu_custom_call.1} parent=28 // pred_fallthru
          _
        // Predicated region
        $region34: #{tpu_custom_call.1} parent=28 // pred_check
          _
        $region35: #{tpu_custom_call.1} parent=28 // pred_check_branch
          %209 = sbr.rel target = $region37
        $region36: #{tpu_custom_call.1} parent=28 // pred_region
          loop: start=0, step=1, limit=1
          $region38: #{tpu_custom_call.1} parent=36 // loop_pre_header
            _
          $region39: #{tpu_custom_call.1} parent=36 // loop_header
            %s212 = sphi 0, %s216
            %p213 = scmp.ge.s32.totalorder %s212, 1
            %s217 = sphi [#allocation2], [#allocation2]
            %s218 = sphi %s5, %s5
          $region40: #{tpu_custom_call.1} parent=36 // loop_header_branch
            %215 = sbr.rel (%p213) target = $region44
          $region41: #{tpu_custom_call.1} parent=36 // loop_body
            %v219 = vld [vmem:[%s217] sm:$0xff]
            %220 = vst [vmem:[%s218] sm:$0xff] %v219
          $region42: #{tpu_custom_call.1} parent=36 // loop_footer
            %s216 = sadd.s32 1, %s212
          $region43: #{tpu_custom_call.1} parent=36 // loop_footer_branch
            %211 = sbr.rel target = $region39
          $region44: #{tpu_custom_call.1} parent=36 // loop_exit
            _
        $region37: #{tpu_custom_call.1} parent=28 // pred_fallthru
          _
      $region29: #{tpu_custom_call.1} parent=24 // pred_fallthru
        _
      %235 = vnop
    $region25: #{tpu_custom_call.1} parent=1 // pred_fallthru
      _
    // Predicated region
    $region60: #{tpu_custom_call.1} parent=1 // pred_check
      _
    $region61: #{tpu_custom_call.1} parent=1 // pred_check_branch
      %237 = sbr.rel (0) target = $region63
    $region62: #{tpu_custom_call.1} parent=1 // pred_region
      _
    $region63: #{tpu_custom_call.1} parent=1 // pred_fallthru
      _

</llo_original>
